<compile_context>
chip_gen: v6e
topology: v6e:2x2x1
jax: 0.10.0
libtpu: 0.0.40
codegen_flags: <defaults>
</compile_context>

<pallas_src>
import jax
import jax.numpy as jnp
from jax.experimental import pallas as pl
from jax.experimental.pallas import tpu as pltpu


def _packed_lin_sigmoid_kernel(x_ref, wp_ref, b_ref, o_ref):
    # x_ref: (tm, 128) VMEM   wp_ref: (128, P) VMEM (block-diag packed weight)
    # b_ref: (1, 1) SMEM      o_ref: (tm, P) VMEM
    y = jnp.dot(x_ref[...], wp_ref[...],
                preferred_element_type=jnp.float32) + b_ref[0, 0]
    # Exact sigmoid: exp lands on the EUP, the f32 divide on the VPU; both are
    # hidden under the x DMA (HBM-read-bound kernel).
    o_ref[...] = (1.0 / (1.0 + jnp.exp(-y))).astype(o_ref.dtype)


def _rowvec_lin_sigmoid_kernel(x_ref, w_ref, b_ref, o_ref):
    # Fallback path for shapes that cannot be lane-packed.
    # x_ref: (tm, C) VMEM   w_ref: (1, C) VMEM   b_ref: (1,1) SMEM   o_ref: (tm, 1)
    y = jnp.sum(x_ref[...] * w_ref[...], axis=-1, keepdims=True) + b_ref[0, 0]
    o_ref[...] = (1.0 / (1.0 + jnp.exp(-y))).astype(o_ref.dtype)


_MAX_TILE_PACKED = 16384     # packed rows: 8 MiB/buffer -> 16 MiB double-buffered x
_SINGLE_BLOCK_MAX = 2048     # <= 1 MiB tile: launch-overhead regime, one block


def _pick_packed_tile(m_rows):
    """Row tile for the lane-dense (m_rows, 128) f32 input (512 B per row)."""
    if m_rows <= _SINGLE_BLOCK_MAX:
        return m_rows                       # single full-extent block
    # >= 2 grid steps (v7x has 2 TensorCores) and pipelined DMA/compute overlap.
    return min(_MAX_TILE_PACKED, pl.cdiv(pl.cdiv(m_rows, 2), 8) * 8)


def _pick_fallback_tile(n_rows, n_cols):
    """Row tile for the un-packed (n_rows, C) path, with lane-padded accounting."""
    padded_row_bytes = pl.cdiv(n_cols, 128) * 128 * 4   # real VMEM bytes per row
    max_tile = max(8, ((8 << 20) // padded_row_bytes) // 8 * 8)  # 16 MiB dbl-buf
    if n_rows <= min(max_tile, _SINGLE_BLOCK_MAX):
        return n_rows
    return min(max_tile, max(8, pl.cdiv(pl.cdiv(n_rows, 2), 8) * 8))


def lin_model_forward(x, w, b):
    """x: (N, C) f32; w: (1, C) nn.Linear weight; b: (1,). Returns sigmoid(x @ w.T + b), (N, 1)."""
    N, C = x.shape
    w_row = jnp.reshape(w, (1, C)).astype(jnp.float32)
    b_sc = jnp.reshape(b, (1, 1)).astype(jnp.float32)

    can_pack = (C <= 128) and (128 % C == 0)
    pack = (128 // C) if can_pack else 1

    compiler_params = pltpu.CompilerParams(
        dimension_semantics=("parallel",),
        vmem_limit_bytes=32 << 20,   # safe on all gens (v7x physical = 64 MiB)
    )

    if can_pack and (N % pack == 0):
        # ---- lane-dense packed path -------------------------------------
        M = N // pack
        lanes = pack * C            # == 128 (or C when C == 128)
        x_packed = jnp.reshape(x, (M, lanes))   # free row-major reshape
        # Block-diagonal packing of w: one MXU matmul computes the per-original-
        # row dot products.  Built once in the wrapper (not per grid step).
        w_pack = jnp.kron(jnp.eye(pack, dtype=jnp.float32),
                          jnp.reshape(w_row, (C, 1)))          # (lanes, pack)
        tm = _pick_packed_tile(M)
        grid = (pl.cdiv(M, tm),)    # no jnp.pad: ragged last block is masked

        out = pl.pallas_call(
            _packed_lin_sigmoid_kernel,
            out_shape=jax.ShapeDtypeStruct((M, pack), x.dtype),
            grid_spec=pltpu.PrefetchScalarGridSpec(
                num_scalar_prefetch=0,
                grid=grid,
                in_specs=[
                    pl.BlockSpec((tm, lanes), lambda i: (i, 0)),     # x tile
                    pl.BlockSpec((lanes, pack), lambda i: (0, 0)),   # packed W (resident)
                    pl.BlockSpec(memory_space=pltpu.MemorySpace.SMEM),  # bias scalar
                ],
                out_specs=pl.BlockSpec((tm, pack), lambda i: (i, 0)),
            ),
            compiler_params=compiler_params,
        )(x_packed, w_pack, b_sc)
        return jnp.reshape(out, (N, 1))          # free row-major reshape

    # ---- fallback path (C does not pack into 128 lanes, or N % pack != 0) ---
    tm = _pick_fallback_tile(N, C)
    grid = (pl.cdiv(N, tm),)
    out = pl.pallas_call(
        _rowvec_lin_sigmoid_kernel,
        out_shape=jax.ShapeDtypeStruct((N, 1), x.dtype),
        grid_spec=pltpu.PrefetchScalarGridSpec(
            num_scalar_prefetch=0,
            grid=grid,
            in_specs=[
                pl.BlockSpec((tm, C), lambda i: (i, 0)),
                pl.BlockSpec((1, C), lambda i: (0, 0)),
                pl.BlockSpec(memory_space=pltpu.MemorySpace.SMEM),
            ],
            out_specs=pl.BlockSpec((tm, 1), lambda i: (i, 0)),
        ),
        compiler_params=compiler_params,
    )(x, w_row, b_sc)
    return out


if __name__ == "__main__":
    key = jax.random.PRNGKey(0)
    k_x, k_w, k_b = jax.random.split(key, 3)

    # Small shapes consistent with the module: data is (w*h, out_channels).
    w_img, h_img, out_channels = 16, 16, 32
    N = w_img * h_img                       # 256 rows
    C = out_channels

    x = jax.random.normal(k_x, (N, C), dtype=jnp.float32)

    # nn.Linear default-style init: uniform(-1/sqrt(C), 1/sqrt(C)).
    bound = 1.0 / jnp.sqrt(jnp.float32(C))
    w = jax.random.uniform(k_w, (1, C), minval=-bound, maxval=bound,
                           dtype=jnp.float32)
    b = jax.random.uniform(k_b, (1,), minval=-bound, maxval=bound,
                           dtype=jnp.float32)

    out = jax.block_until_ready(lin_model_forward(x, w, b))

    # Exact-f32 VPU reference (no MXU precision ambiguity in the reference).
    ref = jax.nn.sigmoid(jnp.sum(x * w, axis=-1, keepdims=True) + b)
    assert out.shape == (N, 1)
    err = float(jnp.max(jnp.abs(out - ref)))
    assert err < 2e-3, f"max abs err {err}"

    print("KERNEL_OK")
</pallas_src>

<mosaic_0001>
module attributes {stable_mosaic.version = 11 : i64} {
  func.func @_packed_lin_sigmoid_kernel(%arg0: i32, %arg1: memref<64x128xf32, #tpu.memory_space<vmem>>, %arg2: memref<128x4xf32, #tpu.memory_space<vmem>>, %arg3: memref<1x1xf32, #tpu.memory_space<smem>>, %arg4: memref<64x4xf32, #tpu.memory_space<vmem>>) attributes {dimension_semantics = [#tpu.dimension_semantics<parallel>], iteration_bounds = array<i64: 1>, scalar_prefetch = 0 : i64, scratch_operands = 0 : i64, tpu.core_type = #tpu.core_type<tc>, window_params = [{transform_indices = @transform_0, window_bounds = array<i64: 64, 128>}, {pipeline_mode = #tpu.pipeline_mode<synchronous>, transform_indices = @transform_1, window_bounds = array<i64: 128, 4>}, {transform_indices = @transform_2, window_bounds = array<i64: 1, 1>}, {transform_indices = @transform_3, window_bounds = array<i64: 64, 4>}]} {
    %c0 = arith.constant 0 : index
    %c0_0 = arith.constant 0 : index
    %0 = vector.load %arg1[%c0, %c0_0] : memref<64x128xf32, #tpu.memory_space<vmem>>, vector<64x128xf32>
    %c0_1 = arith.constant 0 : index
    %c0_2 = arith.constant 0 : index
    %1 = vector.load %arg2[%c0_1, %c0_2] : memref<128x4xf32, #tpu.memory_space<vmem>>, vector<128x4xf32>
    %cst = arith.constant dense<0.000000e+00> : vector<64x4xf32>
    %2 = tpu.matmul %0, %1, %cst {dimension_numbers = #tpu.dot_dimension_numbers<[1], [0], [0], [1], [0, 0, 1, 1], [], []>} : vector<64x128xf32>, vector<128x4xf32>, vector<64x4xf32> -> vector<64x4xf32>
    %c0_3 = arith.constant 0 : index
    %c0_4 = arith.constant 0 : index
    %3 = memref.load %arg3[%c0_3, %c0_4] : memref<1x1xf32, #tpu.memory_space<smem>>
    %4 = vector.broadcast %3 : f32 to vector<64x4xf32>
    %5 = arith.addf %2, %4 : vector<64x4xf32>
    %cst_5 = arith.constant 0.000000e+00 : f32
    %6 = vector.broadcast %cst_5 : f32 to vector<64x4xf32>
    %7 = arith.subf %6, %5 : vector<64x4xf32>
    %8 = math.exp %7 : vector<64x4xf32>
    %cst_6 = arith.constant 1.000000e+00 : f32
    %9 = vector.broadcast %cst_6 : f32 to vector<64x4xf32>
    %10 = arith.addf %9, %8 : vector<64x4xf32>
    %cst_7 = arith.constant 1.000000e+00 : f32
    %11 = vector.broadcast %cst_7 : f32 to vector<64x4xf32>
    %12 = arith.divf %11, %10 : vector<64x4xf32>
    %c0_8 = arith.constant 0 : index
    %c0_9 = arith.constant 0 : index
    %13 = vector.load %arg4[%c0_8, %c0_9] : memref<64x4xf32, #tpu.memory_space<vmem>>, vector<64x4xf32>
    tpu.vector_store %arg4[%c0_8, %c0_9], %12 {strides = array<i32>} : memref<64x4xf32, #tpu.memory_space<vmem>>, vector<64x4xf32>,
    return
  }
  func.func @transform_0(%arg0: i32) -> (i32, i32) {
    %c0_i32 = arith.constant 0 : i32
    %c0_i32_0 = arith.constant 0 : i32
    return %arg0, %c0_i32 : i32, i32
  }
  func.func @transform_1(%arg0: i32) -> (i32, i32) {
    %c0_i32 = arith.constant 0 : i32
    %c0_i32_0 = arith.constant 0 : i32
    %c0_i32_1 = arith.constant 0 : i32
    return %c0_i32, %c0_i32_0 : i32, i32
  }
  func.func @transform_2(%arg0: i32) -> (i32, i32) {
    %c0_i32 = arith.constant 0 : i32
    %c0_i32_0 = arith.constant 0 : i32
    %c0_i32_1 = arith.constant 0 : i32
    return %c0_i32, %c0_i32_0 : i32, i32
  }
  func.func @transform_3(%arg0: i32) -> (i32, i32) {
    %c0_i32 = arith.constant 0 : i32
    %c0_i32_0 = arith.constant 0 : i32
    return %arg0, %c0_i32 : i32, i32
  }
}

</mosaic_0001>

<llo_original>
// kernel: tpu_custom_call.1
$region0: #{tpu_custom_call.1}
  #allocation0 [shape = 'u32[]', space=smem, size = 0x4, offset = 0x4, fixed_abs, tag = 'smem constant byte address 0x4 - core index']
  #allocation1 [shape = 'u32[144,128]{1,0:T(1,128)}', space=vmem, size = 0x12000, scoped, tag = 'internal scratch']
  #allocation2 [shape = 'f32[1,1]{1,0:T(1,128)S(6)}', space=smem, size = 0x200, scoped, tag = 'scoped memory for tpu_custom_call.1']
  %s0 = inlined_call_operand.vmem [shape: f32[64,128], index: 0, kind: input, shape index: {}]
  %s1 = inlined_call_operand.vmem [shape: f32[128,4], index: 1, kind: input, shape index: {}]
  %s2 = inlined_call_operand.<no memory space> [shape: f32[1,1], index: 2, kind: input, shape index: {}]
  %s3 = inlined_call_operand.vmem [shape: f32[64,4], index: 3, kind: output, shape index: {}]
  %s4 = sld [smem:[#allocation0]]
  $region22: #{tpu_custom_call.1} parent=0
    _
  %s6 = ssub.s32 1, %s4
  %s7 = scalar_select 0, %s6, %s4
  %8 = sst [smem:[#allocation2]] %s2
  // Predicated region
  $region2: #{tpu_custom_call.1} parent=0 // pred_check
    _
  $region3: #{tpu_custom_call.1} parent=0 // pred_check_branch
    %10 = sbr.rel (0) target = $region5
  $region4: #{tpu_custom_call.1} parent=0 // pred_region
    _
  $region5: #{tpu_custom_call.1} parent=0 // pred_fallthru
    _
  // Predicated region
  $region6: #{tpu_custom_call.1} parent=0 // pred_check
    _
  $region7: #{tpu_custom_call.1} parent=0 // pred_check_branch
    %12 = sbr.rel (0) target = $region9
  $region8: #{tpu_custom_call.1} parent=0 // pred_region
    _
  $region9: #{tpu_custom_call.1} parent=0 // pred_fallthru
    _
  // Predicated region
  $region10: #{tpu_custom_call.1} parent=0 // pred_check
    _
  $region11: #{tpu_custom_call.1} parent=0 // pred_check_branch
    %14 = sbr.rel (0) target = $region13
  $region12: #{tpu_custom_call.1} parent=0 // pred_region
    _
  $region13: #{tpu_custom_call.1} parent=0 // pred_fallthru
    _
  %v15 = vld [vmem:[%s0] sm:$0xff]
  %v16 = vld [vmem:[%s0 + $0x8] sm:$0xff]
  %v17 = vld [vmem:[%s0 + $0x10] sm:$0xff]
  %v18 = vld [vmem:[%s0 + $0x18] sm:$0xff]
  %v19 = vld [vmem:[%s0 + $0x20] sm:$0xff]
  %v20 = vld [vmem:[%s0 + $0x28] sm:$0xff]
  %v21 = vld [vmem:[%s0 + $0x30] sm:$0xff]
  %v22 = vld [vmem:[%s0 + $0x38] sm:$0xff]
  %v23 = vld [vmem:[%s1] sm:$0xff]
  %v24 = vld [vmem:[%s1 + $0x8] sm:$0xff]
  %v25 = vld [vmem:[%s1 + $0x10] sm:$0xff]
  %v26 = vld [vmem:[%s1 + $0x18] sm:$0xff]
  %v27 = vld [vmem:[%s1 + $0x20] sm:$0xff]
  %v28 = vld [vmem:[%s1 + $0x28] sm:$0xff]
  %v29 = vld [vmem:[%s1 + $0x30] sm:$0xff]
  %v30 = vld [vmem:[%s1 + $0x38] sm:$0xff]
  %v31 = vld [vmem:[%s1 + $0x40] sm:$0xff]
  %v32 = vld [vmem:[%s1 + $0x48] sm:$0xff]
  %v33 = vld [vmem:[%s1 + $0x50] sm:$0xff]
  %v34 = vld [vmem:[%s1 + $0x58] sm:$0xff]
  %v35 = vld [vmem:[%s1 + $0x60] sm:$0xff]
  %v36 = vld [vmem:[%s1 + $0x68] sm:$0xff]
  %v37 = vld [vmem:[%s1 + $0x70] sm:$0xff]
  %v38 = vld [vmem:[%s1 + $0x78] sm:$0xff]
  %s39 = sld [smem:[#allocation2]]
  %v40 = vstv %s39
  %41 = vmatprep.subr.mxu0 0.0
  %42 = vmatpush1.msra.mxu0 %v38
  %43 = vmatprep.subr.mxu0 0.0
  %44 = vmatpush1.msra.mxu0 %v37
  %45 = vmatprep.subr.mxu0 0.0
  %46 = vmatpush1.msra.mxu0 %v36
  %47 = vmatprep.subr.mxu0 0.0
  %48 = vmatpush1.msra.mxu0 %v35
  %49 = vmatprep.subr.mxu0 0.0
  %50 = vmatpush1.msra.mxu0 %v34
  %51 = vmatprep.subr.mxu0 0.0
  %52 = vmatpush1.msra.mxu0 %v33
  %53 = vmatprep.subr.mxu0 0.0
  %54 = vmatpush1.msra.mxu0 %v32
  %55 = vmatprep.subr.mxu0 0.0
  %56 = vmatpush1.msra.mxu0 %v31
  %57 = vmatprep.subr.mxu0 0.0
  %58 = vmatpush1.msra.mxu0 %v30
  %59 = vmatprep.subr.mxu0 0.0
  %60 = vmatpush1.msra.mxu0 %v29
  %61 = vmatprep.subr.mxu0 0.0
  %62 = vmatpush1.msra.mxu0 %v28
  %63 = vmatprep.subr.mxu0 0.0
  %64 = vmatpush1.msra.mxu0 %v27
  %65 = vmatprep.subr.mxu0 0.0
  %66 = vmatpush1.msra.mxu0 %v26
  %67 = vmatprep.subr.mxu0 0.0
  %68 = vmatpush1.msra.mxu0 %v25
  %69 = vmatprep.subr.mxu0 0.0
  %70 = vmatpush1.msra.mxu0 %v24
  %71 = vmatprep.subr.mxu0 0.0
  %72 = vmatpush1.msra.mxu0 %v23
  %73 = vmatprep.subr.mxu0 0.0
  %74 = vmatpush2.msra.mxu0 0.0
  %75 = vmatprep.subr.mxu0 0.0
  %76 = vmatpush2.msra.mxu0 0.0
  %77 = vmatprep.subr.mxu0 0.0
  %78 = vmatpush2.msra.mxu0 0.0
  %79 = vmatprep.subr.mxu0 0.0
  %80 = vmatpush2.msra.mxu0 0.0
  %81 = vmatprep.subr.mxu0 0.0
  %82 = vmatpush2.msra.mxu0 0.0
  %83 = vmatprep.subr.mxu0 0.0
  %84 = vmatpush2.msra.mxu0 0.0
  %85 = vmatprep.subr.mxu0 0.0
  %86 = vmatpush2.msra.mxu0 0.0
  %87 = vmatprep.subr.mxu0 0.0
  %88 = vmatpush2.msra.mxu0 0.0
  %89 = vmatprep.subr.mxu0 0.0
  %90 = vmatpush2.msra.mxu0 0.0
  %91 = vmatprep.subr.mxu0 0.0
  %92 = vmatpush2.msra.mxu0 0.0
  %93 = vmatprep.subr.mxu0 0.0
  %94 = vmatpush2.msra.mxu0 0.0
  %95 = vmatprep.subr.mxu0 0.0
  %96 = vmatpush2.msra.mxu0 0.0
  %97 = vmatprep.subr.mxu0 0.0
  %98 = vmatpush2.msra.mxu0 0.0
  %99 = vmatprep.subr.mxu0 0.0
  %100 = vmatpush2.msra.mxu0 0.0
  %101 = vmatprep.subr.mxu0 0.0
  %102 = vmatpush2.msra.mxu0 0.0
  %103 = vmatprep.subr.mxu0 0.0
  %104 = vmatpush2.msra.mxu0 0.0
  %105 = vmatprep.mubr.f32.mxu0 0.0
  %106 = vmatmul.mubr.f32.gmra.mxu0 %v15
  %v107 = vpop.f32.mrf.mxu0
  %v108 = vadd.f32 %v40, %v107
  %v109 = vpop.f32.mrf.mxu0
  %110 = vmatprep.mubr.f32.mxu0 0.0
  %111 = vmatmul.mubr.f32.gmra.mxu0 %v16
  %v112 = vpop.f32.mrf.mxu0
  %v113 = vadd.f32 %v40, %v112
  %v114 = vpop.f32.mrf.mxu0
  %115 = vmatprep.mubr.f32.mxu0 0.0
  %116 = vmatmul.mubr.f32.gmra.mxu0 %v17
  %v117 = vpop.f32.mrf.mxu0
  %v118 = vadd.f32 %v40, %v117
  %v119 = vpop.f32.mrf.mxu0
  %120 = vmatprep.mubr.f32.mxu0 0.0
  %121 = vmatmul.mubr.f32.gmra.mxu0 %v18
  %v122 = vpop.f32.mrf.mxu0
  %v123 = vadd.f32 %v40, %v122
  %v124 = vpop.f32.mrf.mxu0
  %125 = vmatprep.mubr.f32.mxu0 0.0
  %126 = vmatmul.mubr.f32.gmra.mxu0 %v19
  %v127 = vpop.f32.mrf.mxu0
  %v128 = vadd.f32 %v40, %v127
  %v129 = vpop.f32.mrf.mxu0
  %130 = vmatprep.mubr.f32.mxu0 0.0
  %131 = vmatmul.mubr.f32.gmra.mxu0 %v20
  %v132 = vpop.f32.mrf.mxu0
  %v133 = vadd.f32 %v40, %v132
  %v134 = vpop.f32.mrf.mxu0
  %135 = vmatprep.mubr.f32.mxu0 0.0
  %136 = vmatmul.mubr.f32.gmra.mxu0 %v21
  %v137 = vpop.f32.mrf.mxu0
  %v138 = vadd.f32 %v40, %v137
  %v139 = vpop.f32.mrf.mxu0
  %140 = vmatprep.mubr.f32.mxu0 0.0
  %141 = vmatmul.mubr.f32.gmra.mxu0 %v22
  %v142 = vpop.f32.mrf.mxu0
  %v143 = vadd.f32 %v40, %v142
  %v144 = vpop.f32.mrf.mxu0
  %145 = vdwg.mxu0
  %v146 = vsub.f32 0.0, %v108
  %v147 = vsub.f32 0.0, %v113
  %v148 = vsub.f32 0.0, %v118
  %v149 = vsub.f32 0.0, %v123
  %v150 = vsub.f32 0.0, %v128
  %v151 = vsub.f32 0.0, %v133
  %v152 = vsub.f32 0.0, %v138
  %v153 = vsub.f32 0.0, %v143
  %v154 = vmul.f32 %v146, 1.442695
  %v155 = vpow.pop %v154
  %v156 = vmul.f32 %v147, 1.442695
  %v157 = vpow.pop %v156
  %v158 = vmul.f32 %v148, 1.442695
  %v159 = vpow.pop %v158
  %v160 = vmul.f32 %v149, 1.442695
  %v161 = vpow.pop %v160
  %v162 = vmul.f32 %v150, 1.442695
  %v163 = vpow.pop %v162
  %v164 = vmul.f32 %v151, 1.442695
  %v165 = vpow.pop %v164
  %v166 = vmul.f32 %v152, 1.442695
  %v167 = vpow.pop %v166
  %v168 = vmul.f32 %v153, 1.442695
  %v169 = vpow.pop %v168
  %v170 = vadd.f32 %v155, 1.0
  %v171 = vadd.f32 %v157, 1.0
  %v172 = vadd.f32 %v159, 1.0
  %v173 = vadd.f32 %v161, 1.0
  %v174 = vadd.f32 %v163, 1.0
  %v175 = vadd.f32 %v165, 1.0
  %v176 = vadd.f32 %v167, 1.0
  %v177 = vadd.f32 %v169, 1.0
  %v178 = vrcp.pop %v170
  %v179 = vmul.f32 1.0, %v178
  %v180 = vrcp.pop %v171
  %v181 = vmul.f32 1.0, %v180
  %v182 = vrcp.pop %v172
  %v183 = vmul.f32 1.0, %v182
  %v184 = vrcp.pop %v173
  %v185 = vmul.f32 1.0, %v184
  %v186 = vrcp.pop %v174
  %v187 = vmul.f32 1.0, %v186
  %v188 = vrcp.pop %v175
  %v189 = vmul.f32 1.0, %v188
  %v190 = vrcp.pop %v176
  %v191 = vmul.f32 1.0, %v190
  %v192 = vrcp.pop %v177
  %v193 = vmul.f32 1.0, %v192
  %vm194 = vcmask 31744
  %195 = vst.msk [vmem:[%s3] sm:$0xff] %vm194, %v179
  %196 = vst.msk [vmem:[%s3 + $0x8] sm:$0xff] %vm194, %v181
  %197 = vst.msk [vmem:[%s3 + $0x10] sm:$0xff] %vm194, %v183
  %198 = vst.msk [vmem:[%s3 + $0x18] sm:$0xff] %vm194, %v185
  %199 = vst.msk [vmem:[%s3 + $0x20] sm:$0xff] %vm194, %v187
  %200 = vst.msk [vmem:[%s3 + $0x28] sm:$0xff] %vm194, %v189
  %201 = vst.msk [vmem:[%s3 + $0x30] sm:$0xff] %vm194, %v191
  %202 = vst.msk [vmem:[%s3 + $0x38] sm:$0xff] %vm194, %v193
  // Predicated region
  $region14: #{tpu_custom_call.1} parent=0 // pred_check
    _
  $region15: #{tpu_custom_call.1} parent=0 // pred_check_branch
    %204 = sbr.rel (0) target = $region17
  $region16: #{tpu_custom_call.1} parent=0 // pred_region
    _
  $region17: #{tpu_custom_call.1} parent=0 // pred_fallthru
    _
  // Predicated region
  $region18: #{tpu_custom_call.1} parent=0 // pred_check
    _
  $region19: #{tpu_custom_call.1} parent=0 // pred_check_branch
    %206 = sbr.rel (0) target = $region21
  $region20: #{tpu_custom_call.1} parent=0 // pred_region
    _
  $region21: #{tpu_custom_call.1} parent=0 // pred_fallthru
    _

</llo_original>
